<compile_context>
chip_gen: v6e
topology: v6e:2x2x1
jax: 0.10.0
libtpu: 0.0.40
codegen_flags: <defaults>
</compile_context>

<pallas_src>
import math

import jax
import jax.numpy as jnp
from jax.experimental import pallas as pl
from jax.experimental.pallas import tpu as pltpu


def _time_embed_kernel(t_ref, table_ref, w2_ref, b2_ref, o_ref):
    """Fused TimeEmbedding on a lane-packed layout.

    t_ref     : [rb, P*T]  int32    one-hot targets (j*T + t), repeated T times per slot
    table_ref : [P*T, P*D] float32  block-diag of (sin_table @ W1 + b1)
    w2_ref    : [P*D, P*D] bfloat16 block-diag of W2
    b2_ref    : [1,  P*D]  float32  tiled b2
    o_ref     : [rb, P*D]  float32
    """
    rb, pT = t_ref.shape
    lane = jax.lax.broadcasted_iota(jnp.int32, (rb, pT), 1)
    onehot = (t_ref[...] == lane).astype(jnp.float32)            # exact 0/1 row select

    # Embedding gather with Linear-1 pre-folded into the table (f32, exact).
    x = jnp.dot(onehot, table_ref[...], preferred_element_type=jnp.float32)

    # Swish (exp -> EUP slot).
    h = x * jax.nn.sigmoid(x)

    # Linear-2: native bf16 MXU pass, f32 accumulate.
    y = jnp.dot(h.astype(jnp.bfloat16), w2_ref[...],
                preferred_element_type=jnp.float32) + b2_ref[...]

    o_ref[...] = y.astype(o_ref.dtype)


def make_sinusoidal_table(T, d_model):
    """Matches the PyTorch construction (interleaved sin/cos)."""
    assert d_model % 2 == 0
    freqs = jnp.exp(-(jnp.arange(0, d_model, 2, dtype=jnp.float32) / d_model)
                    * math.log(10000.0))                          # [d_model//2]
    pos = jnp.arange(T, dtype=jnp.float32)                        # [T]
    ang = pos[:, None] * freqs[None, :]                           # [T, d_model//2]
    emb = jnp.stack([jnp.sin(ang), jnp.cos(ang)], axis=-1)        # [T, d_model//2, 2]
    return emb.reshape(T, d_model).astype(jnp.float32)            # [T, d_model]


def init_time_embedding_params(key, d_model):
    """xavier_uniform weights, zero biases (as in TimeEmbedding.initialize())."""
    k1, k2 = jax.random.split(key)
    bound = math.sqrt(6.0 / (d_model + d_model))
    w1 = jax.random.uniform(k1, (d_model, d_model), jnp.float32, -bound, bound)
    w2 = jax.random.uniform(k2, (d_model, d_model), jnp.float32, -bound, bound)
    b1 = jnp.zeros((d_model,), jnp.float32)
    b2 = jnp.zeros((d_model,), jnp.float32)
    return w1, b1, w2, b2


def _pick_block_rows(rows, block_rows):
    """Largest block (<= block_rows) that divides `rows`, multiple of 8 when tiled;
    guarantees >=2 blocks when possible so v7x megacore sharding engages."""
    if rows <= 8:
        return rows
    target = min(block_rows, rows)
    if target >= rows:
        target = max(8, rows // 2)
    cand = (target // 8) * 8
    while cand >= 8:
        if rows % cand == 0:
            return cand
        cand -= 8
    return rows


def time_embedding_forward(t, table, w1, b1, w2, b2, *, pack=None, block_rows=1024):
    """t: int32 [B] -> [B, d_model] float32.

    table: [T, D] f32 sinusoidal table.  w1/b1, w2/b2: Linear(D, D) params,
    stored [in, out] so the math is x @ W + b (== PyTorch x @ W_pt.T + b).
    W2 is used in bf16 (f32 accumulate); W1/b1 stay exact f32 (folded offline).
    Set pack=256//D on v6e/v7x to fill the 256-wide MXU.
    """
    T, D = table.shape
    B = t.shape[0]
    if pack is None:
        pack = max(1, 128 // D)          # lane-dense output: pack*D ~ 128 lanes

    # --- precompute (wrapper-side, once per weight set) --------------------
    fused = table.astype(jnp.float32) @ w1.astype(jnp.float32) + b1.astype(jnp.float32)
    eye = jnp.eye(pack, dtype=jnp.float32)
    table_bd = jnp.kron(eye, fused)                                      # [P*T, P*D] f32
    w2_bd = jnp.kron(eye, w2.astype(jnp.float32)).astype(jnp.bfloat16)   # [P*D, P*D] bf16
    b2_t = jnp.tile(b2.astype(jnp.float32)[None, :], (1, pack))          # [1, P*D]  f32

    # --- pack the indices ---------------------------------------------------
    rows = -(-B // pack)                 # cdiv
    b_pad = rows * pack
    t_cl = jnp.clip(t.astype(jnp.int32), 0, T - 1)                       # take-like clamp
    if b_pad != B:
        t_cl = jnp.concatenate([t_cl, jnp.zeros((b_pad - B,), jnp.int32)])
    t_cl = t_cl.reshape(rows, pack)
    t_target = t_cl + (jnp.arange(pack, dtype=jnp.int32) * T)[None, :]   # slot offsets
    t_expand = jnp.repeat(t_target, T, axis=1)                           # [rows, P*T]

    # --- launch --------------------------------------------------------------
    rb = _pick_block_rows(rows, block_rows)
    grid = (rows // rb,)
    pT, pD = pack * T, pack * D

    out = pl.pallas_call(
        _time_embed_kernel,
        out_shape=jax.ShapeDtypeStruct((rows, pD), jnp.float32),
        grid=grid,
        in_specs=[
            pl.BlockSpec((rb, pT), lambda i: (i, 0)),    # packed one-hot targets
            pl.BlockSpec((pT, pD), lambda i: (0, 0)),    # block-diag fused table (f32)
            pl.BlockSpec((pD, pD), lambda i: (0, 0)),    # block-diag W2 (bf16)
            pl.BlockSpec((1, pD), lambda i: (0, 0)),     # tiled b2
        ],
        out_specs=pl.BlockSpec((rb, pD), lambda i: (i, 0)),
        compiler_params=pltpu.CompilerParams(
            dimension_semantics=("parallel",)),
    )(t_expand, table_bd, w2_bd, b2_t)

    return out.reshape(b_pad, D)[:B]


def time_embedding_reference(t, table, w1, b1, w2, b2):
    x = jnp.take(table, t, axis=0)
    h = x @ w1 + b1
    h = h * jax.nn.sigmoid(h)
    return h @ w2 + b2


if __name__ == "__main__":
    T_steps = 16    # number of diffusion timesteps in the table
    d_model = 32    # num_channels[-1] in ODUNetTransfer
    B = 8           # batch of timestep indices

    key = jax.random.PRNGKey(0)
    k_t, k_params = jax.random.split(key)

    table = make_sinusoidal_table(T_steps, d_model)
    w1, b1, w2, b2 = init_time_embedding_params(k_params, d_model)
    t = jax.random.randint(k_t, (B,), 0, T_steps, dtype=jnp.int32)

    out = time_embedding_forward(t, table, w1, b1, w2, b2)
    out = jax.block_until_ready(out)

    # Reference uses the same bf16-rounded W2 (the kernel's precision contract);
    # remaining difference is the bf16 cast of the Swish output feeding Linear-2.
    w2_r = w2.astype(jnp.bfloat16).astype(jnp.float32)
    ref = time_embedding_reference(t, table, w1, b1, w2_r, b2)

    assert out.shape == (B, d_model)
    assert jnp.allclose(out, ref, atol=2e-2, rtol=2e-2), \
        float(jnp.max(jnp.abs(out - ref)))

    print("KERNEL_OK")
</pallas_src>

<mosaic_0001>
module attributes {stable_mosaic.version = 11 : i64} {
  func.func @_time_embed_kernel(%arg0: i32, %arg1: memref<2x64xi32, #tpu.memory_space<vmem>>, %arg2: memref<64x128xf32, #tpu.memory_space<vmem>>, %arg3: memref<128x128xbf16, #tpu.memory_space<vmem>>, %arg4: memref<1x128xf32, #tpu.memory_space<vmem>>, %arg5: memref<2x128xf32, #tpu.memory_space<vmem>>) attributes {dimension_semantics = [#tpu.dimension_semantics<parallel>], iteration_bounds = array<i64: 1>, scalar_prefetch = 0 : i64, scratch_operands = 0 : i64, tpu.core_type = #tpu.core_type<tc>, window_params = [{transform_indices = @transform_0, window_bounds = array<i64: 2, 64>}, {pipeline_mode = #tpu.pipeline_mode<synchronous>, transform_indices = @transform_1, window_bounds = array<i64: 64, 128>}, {pipeline_mode = #tpu.pipeline_mode<synchronous>, transform_indices = @transform_2, window_bounds = array<i64: 128, 128>}, {pipeline_mode = #tpu.pipeline_mode<synchronous>, transform_indices = @transform_3, window_bounds = array<i64: 1, 128>}, {transform_indices = @transform_4, window_bounds = array<i64: 2, 128>}]} {
    %0 = tpu.iota {dimensions = array<i32: 1>} : vector<2x64xi32>
    %c0 = arith.constant 0 : index
    %c0_0 = arith.constant 0 : index
    %1 = vector.load %arg1[%c0, %c0_0] : memref<2x64xi32, #tpu.memory_space<vmem>>, vector<2x64xi32>
    %2 = arith.cmpi eq, %1, %0 : vector<2x64xi32>
    %3 = arith.extui %2 : vector<2x64xi1> to vector<2x64xi32>
    %4 = arith.sitofp %3 : vector<2x64xi32> to vector<2x64xf32>
    %c0_1 = arith.constant 0 : index
    %c0_2 = arith.constant 0 : index
    %5 = vector.load %arg2[%c0_1, %c0_2] : memref<64x128xf32, #tpu.memory_space<vmem>>, vector<64x128xf32>
    %cst = arith.constant dense<0.000000e+00> : vector<2x128xf32>
    %6 = tpu.matmul %4, %5, %cst {dimension_numbers = #tpu.dot_dimension_numbers<[1], [0], [0], [1], [0, 0, 1, 1], [], []>} : vector<2x64xf32>, vector<64x128xf32>, vector<2x128xf32> -> vector<2x128xf32>
    %7 = arith.negf %6 : vector<2x128xf32>
    %8 = math.exp %7 : vector<2x128xf32>
    %cst_3 = arith.constant 1.000000e+00 : f32
    %9 = vector.broadcast %cst_3 : f32 to vector<2x128xf32>
    %10 = arith.addf %9, %8 : vector<2x128xf32>
    %11 = arith.divf %9, %10 : vector<2x128xf32>
    %12 = arith.mulf %6, %11 : vector<2x128xf32>
    %13 = arith.truncf %12 : vector<2x128xf32> to vector<2x128xbf16>
    %c0_4 = arith.constant 0 : index
    %c0_5 = arith.constant 0 : index
    %14 = vector.load %arg3[%c0_4, %c0_5] : memref<128x128xbf16, #tpu.memory_space<vmem>>, vector<128x128xbf16>
    %cst_6 = arith.constant dense<0.000000e+00> : vector<2x128xf32>
    %15 = tpu.matmul %13, %14, %cst_6 {dimension_numbers = #tpu.dot_dimension_numbers<[1], [0], [0], [1], [0, 0, 1, 1], [], []>} : vector<2x128xbf16>, vector<128x128xbf16>, vector<2x128xf32> -> vector<2x128xf32>
    %c0_7 = arith.constant 0 : index
    %c0_8 = arith.constant 0 : index
    %16 = vector.load %arg4[%c0_7, %c0_8] : memref<1x128xf32, #tpu.memory_space<vmem>>, vector<1x128xf32>
    %17 = vector.broadcast %16 : vector<1x128xf32> to vector<2x128xf32>
    %18 = arith.addf %15, %17 : vector<2x128xf32>
    %c0_9 = arith.constant 0 : index
    %c0_10 = arith.constant 0 : index
    %19 = vector.load %arg5[%c0_9, %c0_10] : memref<2x128xf32, #tpu.memory_space<vmem>>, vector<2x128xf32>
    tpu.vector_store %arg5[%c0_9, %c0_10], %18 {strides = array<i32>} : memref<2x128xf32, #tpu.memory_space<vmem>>, vector<2x128xf32>,
    return
  }
  func.func @transform_0(%arg0: i32) -> (i32, i32) {
    %c0_i32 = arith.constant 0 : i32
    %c0_i32_0 = arith.constant 0 : i32
    return %arg0, %c0_i32 : i32, i32
  }
  func.func @transform_1(%arg0: i32) -> (i32, i32) {
    %c0_i32 = arith.constant 0 : i32
    %c0_i32_0 = arith.constant 0 : i32
    %c0_i32_1 = arith.constant 0 : i32
    return %c0_i32, %c0_i32_0 : i32, i32
  }
  func.func @transform_2(%arg0: i32) -> (i32, i32) {
    %c0_i32 = arith.constant 0 : i32
    %c0_i32_0 = arith.constant 0 : i32
    %c0_i32_1 = arith.constant 0 : i32
    return %c0_i32, %c0_i32_0 : i32, i32
  }
  func.func @transform_3(%arg0: i32) -> (i32, i32) {
    %c0_i32 = arith.constant 0 : i32
    %c0_i32_0 = arith.constant 0 : i32
    %c0_i32_1 = arith.constant 0 : i32
    return %c0_i32, %c0_i32_0 : i32, i32
  }
  func.func @transform_4(%arg0: i32) -> (i32, i32) {
    %c0_i32 = arith.constant 0 : i32
    %c0_i32_0 = arith.constant 0 : i32
    return %arg0, %c0_i32 : i32, i32
  }
}

</mosaic_0001>

<llo_original>
// kernel: tpu_custom_call.1
$region0: #{tpu_custom_call.1}
  #allocation0 [shape = 'u32[]', space=smem, size = 0x4, offset = 0x4, fixed_abs, tag = 'smem constant byte address 0x4 - core index']
  #allocation1 [shape = 'u32[144,128]{1,0:T(1,128)}', space=vmem, size = 0x12000, scoped, tag = 'internal scratch']
  %s0 = inlined_call_operand.hbm [shape: s32[2,64], index: 0, kind: input, shape index: {}]
  %s1 = inlined_call_operand.hbm [shape: f32[64,128], index: 1, kind: input, shape index: {}]
  %s2 = inlined_call_operand.hbm [shape: bf16[128,128], index: 2, kind: input, shape index: {}]
  %s3 = inlined_call_operand.vmem [shape: f32[1,128], index: 3, kind: input, shape index: {}]
  %s4 = inlined_call_operand.hbm [shape: f32[2,128], index: 4, kind: output, shape index: {}]
  %s5 = sld [smem:[#allocation0]]
  $region38: #{tpu_custom_call.1} parent=0
    _
  %s7 = ssub.s32 1, %s5
  %s8 = scalar_select 0, %s7, %s5
  $region1: #{tpu_custom_call.1} parent=0
    #allocation2 [shape = 'u8[1024]{0}', space=vmem, size = 0x400, scoped, tag = 'input window, operand 0, single buffered']
    #allocation3 [shape = 's32[1]{0}', space=sflag, size = 0x4, scoped, tag = 'scoped memory for tpu_custom_call.1']
    #allocation4 [shape = 's32[1]{0}', space=sflag, size = 0x4, scoped, tag = 'scoped memory for tpu_custom_call.1']
    #allocation5 [shape = 'u8[32768]{0}', space=vmem, size = 0x8000, scoped, tag = 'input window, operand 1, single buffered']
    #allocation6 [shape = 's32[1]{0}', space=sflag, size = 0x4, scoped, tag = 'scoped memory for tpu_custom_call.1']
    #allocation7 [shape = 'u8[32768]{0}', space=vmem, size = 0x8000, scoped, tag = 'input window, operand 2, single buffered']
    #allocation8 [shape = 'u8[1024]{0}', space=vmem, size = 0x400, scoped, tag = 'output window, operand 0, single buffered']
    %9 = vsyncpa [#allocation3], 0
    %10 = vsyncpa [#allocation6], 0
    %11 = vsyncpa [#allocation4], 0
    // Predicated region
    $region2: #{tpu_custom_call.1} parent=1 // pred_check
      _
    $region3: #{tpu_custom_call.1} parent=1 // pred_check_branch
      %13 = sbr.rel (0) target = $region5
    $region4: #{tpu_custom_call.1} parent=1 // pred_region
      %s15 = ssub.s32 32, 32
      %16 = vsyncadd [#allocation3], %s15
      %s18 = sshll.u32 [#allocation2], 4
      %s19 = int_to_ptr.vmem [resolvable:$true] %s18
      %21 = dma.hbm_to_vmem [thread:$0]  %s0, 32, %s19, [#allocation3]
    $region5: #{tpu_custom_call.1} parent=1 // pred_fallthru
      _
    // Predicated region
    $region6: #{tpu_custom_call.1} parent=1 // pred_check
      _
    $region7: #{tpu_custom_call.1} parent=1 // pred_check_branch
      %23 = sbr.rel (0) target = $region9
    $region8: #{tpu_custom_call.1} parent=1 // pred_region
      %s25 = ssub.s32 1024, 1024
      %26 = vsyncadd [#allocation6], %s25
      %s27 = sshll.u32 [#allocation5], 4
      %s28 = int_to_ptr.vmem [resolvable:$true] %s27
      %33 = dma.hbm_to_vmem [thread:$0]  %s1, 1024, %s28, [#allocation6], 128, 128, 8
    $region9: #{tpu_custom_call.1} parent=1 // pred_fallthru
      _
    // Predicated region
    $region10: #{tpu_custom_call.1} parent=1 // pred_check
      _
    $region11: #{tpu_custom_call.1} parent=1 // pred_check_branch
      %35 = sbr.rel (0) target = $region13
    $region12: #{tpu_custom_call.1} parent=1 // pred_region
      %s37 = ssub.s32 1024, 1024
      %38 = vsyncadd [#allocation6], %s37
      %s39 = sshll.u32 [#allocation7], 4
      %s40 = int_to_ptr.vmem [resolvable:$true] %s39
      %45 = dma.hbm_to_vmem [thread:$0]  %s2, 1024, %s40, [#allocation6], 64, 64, 4
    $region13: #{tpu_custom_call.1} parent=1 // pred_fallthru
      _
    // Predicated region
    $region14: #{tpu_custom_call.1} parent=1 // pred_check
      _
    $region15: #{tpu_custom_call.1} parent=1 // pred_check_branch
      %47 = sbr.rel (0) target = $region17
    $region16: #{tpu_custom_call.1} parent=1 // pred_region
      _
    $region17: #{tpu_custom_call.1} parent=1 // pred_fallthru
      _
    // Predicated region
    $region18: #{tpu_custom_call.1} parent=1 // pred_check
      _
    $region19: #{tpu_custom_call.1} parent=1 // pred_check_branch
      %49 = sbr.rel (0) target = $region21
    $region20: #{tpu_custom_call.1} parent=1 // pred_region
      %50 = dma.done [#allocation3], 32
    $region21: #{tpu_custom_call.1} parent=1 // pred_fallthru
      _
    // Predicated region
    $region22: #{tpu_custom_call.1} parent=1 // pred_check
      _
    $region23: #{tpu_custom_call.1} parent=1 // pred_check_branch
      %52 = sbr.rel (0) target = $region25
    $region24: #{tpu_custom_call.1} parent=1 // pred_region
      %53 = dma.done [#allocation6], 1024
    $region25: #{tpu_custom_call.1} parent=1 // pred_fallthru
      _
    // Predicated region
    $region26: #{tpu_custom_call.1} parent=1 // pred_check
      _
    $region27: #{tpu_custom_call.1} parent=1 // pred_check_branch
      %55 = sbr.rel (0) target = $region29
    $region28: #{tpu_custom_call.1} parent=1 // pred_region
      %56 = dma.done [#allocation6], 1024
    $region29: #{tpu_custom_call.1} parent=1 // pred_fallthru
      _
    %v58 = vlaneseq
    %v59 = vand.u32 %v58, 127
    %v60 = vld [vmem:[#allocation2] sm:$0x3]
    %vm61 = vcmp.eq.s32.totalorder %v60, %v59
    %v62 = vsel %vm61, 1, 0
    %v63 = vcvt.s32.f32 %v62
    %v64 = vld [vmem:[#allocation5] sm:$0xff]
    %v65 = vld [vmem:[#allocation5 + $0x8] sm:$0xff]
    %v66 = vld [vmem:[#allocation5 + $0x10] sm:$0xff]
    %v67 = vld [vmem:[#allocation5 + $0x18] sm:$0xff]
    %v68 = vld [vmem:[#allocation5 + $0x20] sm:$0xff]
    %v69 = vld [vmem:[#allocation5 + $0x28] sm:$0xff]
    %v70 = vld [vmem:[#allocation5 + $0x30] sm:$0xff]
    %v71 = vld [vmem:[#allocation5 + $0x38] sm:$0xff]
    %vm72 = vcmask 523264
    %v74 = vsel %vm72, %v63, 0
    %76 = vmatprep.subr.mxu0 0.0
    %77 = vmatpush1.msra.mxu0 0.0
    %78 = vmatprep.subr.mxu0 0.0
    %79 = vmatpush1.msra.mxu0 0.0
    %80 = vmatprep.subr.mxu0 0.0
    %81 = vmatpush1.msra.mxu0 0.0
    %82 = vmatprep.subr.mxu0 0.0
    %83 = vmatpush1.msra.mxu0 0.0
    %84 = vmatprep.subr.mxu0 0.0
    %85 = vmatpush1.msra.mxu0 0.0
    %86 = vmatprep.subr.mxu0 0.0
    %87 = vmatpush1.msra.mxu0 0.0
    %88 = vmatprep.subr.mxu0 0.0
    %89 = vmatpush1.msra.mxu0 0.0
    %90 = vmatprep.subr.mxu0 0.0
    %91 = vmatpush1.msra.mxu0 0.0
    %92 = vmatprep.subr.mxu0 0.0
    %93 = vmatpush1.msra.mxu0 %v71
    %94 = vmatprep.subr.mxu0 0.0
    %95 = vmatpush1.msra.mxu0 %v70
    %96 = vmatprep.subr.mxu0 0.0
    %97 = vmatpush1.msra.mxu0 %v69
    %98 = vmatprep.subr.mxu0 0.0
    %99 = vmatpush1.msra.mxu0 %v68
    %100 = vmatprep.subr.mxu0 0.0
    %101 = vmatpush1.msra.mxu0 %v67
    %102 = vmatprep.subr.mxu0 0.0
    %103 = vmatpush1.msra.mxu0 %v66
    %104 = vmatprep.subr.mxu0 0.0
    %105 = vmatpush1.msra.mxu0 %v65
    %106 = vmatprep.subr.mxu0 0.0
    %107 = vmatpush1.msra.mxu0 %v64
    %108 = vmatprep.subr.mxu0 0.0
    %109 = vmatpush2.msra.mxu0 0.0
    %110 = vmatprep.subr.mxu0 0.0
    %111 = vmatpush2.msra.mxu0 0.0
    %112 = vmatprep.subr.mxu0 0.0
    %113 = vmatpush2.msra.mxu0 0.0
    %114 = vmatprep.subr.mxu0 0.0
    %115 = vmatpush2.msra.mxu0 0.0
    %116 = vmatprep.subr.mxu0 0.0
    %117 = vmatpush2.msra.mxu0 0.0
    %118 = vmatprep.subr.mxu0 0.0
    %119 = vmatpush2.msra.mxu0 0.0
    %120 = vmatprep.subr.mxu0 0.0
    %121 = vmatpush2.msra.mxu0 0.0
    %122 = vmatprep.subr.mxu0 0.0
    %123 = vmatpush2.msra.mxu0 0.0
    %124 = vmatprep.subr.mxu0 0.0
    %125 = vmatpush2.msra.mxu0 0.0
    %126 = vmatprep.subr.mxu0 0.0
    %127 = vmatpush2.msra.mxu0 0.0
    %128 = vmatprep.subr.mxu0 0.0
    %129 = vmatpush2.msra.mxu0 0.0
    %130 = vmatprep.subr.mxu0 0.0
    %131 = vmatpush2.msra.mxu0 0.0
    %132 = vmatprep.subr.mxu0 0.0
    %133 = vmatpush2.msra.mxu0 0.0
    %134 = vmatprep.subr.mxu0 0.0
    %135 = vmatpush2.msra.mxu0 0.0
    %136 = vmatprep.subr.mxu0 0.0
    %137 = vmatpush2.msra.mxu0 0.0
    %138 = vmatprep.subr.mxu0 0.0
    %139 = vmatpush2.msra.mxu0 0.0
    %140 = vmatprep.mubr.f32.mxu0 0.0
    %141 = vmatmul.mubr.f32.gmra.mxu0 %v74
    %v142 = vpop.f32.mrf.mxu0
    %v143 = vadd.f32 0.0, %v142
    %v144 = vpop.f32.mrf.mxu0
    %145 = vdwg.mxu0
    %v146 = vxor.u32 %v143, 2147483648
    %v147 = vmul.f32 %v146, 1.442695
    %v148 = vpow.pop %v147
    %v149 = vadd.f32 %v148, 1.0
    %v150 = vrcp.pop %v149
    %v151 = vmul.f32 1.0, %v150
    %v152 = vmul.f32 %v143, %v151
    %v153 = vpack.c.bf16 %v152, %v152
    %v154 = vld [vmem:[#allocation7] sm:$0xf]
    %v155 = vld [vmem:[#allocation7 + $0x4] sm:$0xf]
    %v156 = vld [vmem:[#allocation7 + $0x8] sm:$0xf]
    %v157 = vld [vmem:[#allocation7 + $0xc] sm:$0xf]
    %v158 = vld [vmem:[#allocation7 + $0x10] sm:$0xf]
    %v159 = vld [vmem:[#allocation7 + $0x14] sm:$0xf]
    %v160 = vld [vmem:[#allocation7 + $0x18] sm:$0xf]
    %v161 = vld [vmem:[#allocation7 + $0x1c] sm:$0xf]
    %v162 = vld [vmem:[#allocation7 + $0x20] sm:$0xf]
    %v163 = vld [vmem:[#allocation7 + $0x24] sm:$0xf]
    %v164 = vld [vmem:[#allocation7 + $0x28] sm:$0xf]
    %v165 = vld [vmem:[#allocation7 + $0x2c] sm:$0xf]
    %v166 = vld [vmem:[#allocation7 + $0x30] sm:$0xf]
    %v167 = vld [vmem:[#allocation7 + $0x34] sm:$0xf]
    %v168 = vld [vmem:[#allocation7 + $0x38] sm:$0xf]
    %v169 = vld [vmem:[#allocation7 + $0x3c] sm:$0xf]
    %v170 = vld [vmem:[%s3] sm:$0x1]
    %v172 = vlaneseq
    %v173 = vshrl.u32 %v172, 7
    %v174 = vsub.s32 0, %v173
    %v175 = vrot.slane %v170, %v174
    %v193 = vunpack.c.l.b16 %v154
    %v194 = vunpack.c.l.b16 %v155
    %v195 = vunpack.c.l.b16 %v156
    %v196 = vunpack.c.l.b16 %v157
    %v197 = vunpack.c.l.b16 %v158
    %v198 = vunpack.c.l.b16 %v159
    %v199 = vunpack.c.l.b16 %v160
    %v200 = vunpack.c.l.b16 %v161
    %v201 = vunpack.c.l.b16 %v162
    %v202 = vunpack.c.l.b16 %v163
    %v203 = vunpack.c.l.b16 %v164
    %v204 = vunpack.c.l.b16 %v165
    %v205 = vunpack.c.l.b16 %v166
    %v206 = vunpack.c.l.b16 %v167
    %v207 = vunpack.c.l.b16 %v168
    %v208 = vunpack.c.l.b16 %v169
    %v209 = vpack.c.b16 %v194, %v193
    %v210 = vpack.c.b16 %v196, %v195
    %v211 = vpack.c.b16 %v198, %v197
    %v212 = vpack.c.b16 %v200, %v199
    %v213 = vpack.c.b16 %v202, %v201
    %v214 = vpack.c.b16 %v204, %v203
    %v215 = vpack.c.b16 %v206, %v205
    %v216 = vpack.c.b16 %v208, %v207
    %225 = vmatprep.subr.bf16.mxu0 0
    %226 = vmatpush1.bf16.msra.mxu0 %v216
    %227 = vmatprep.subr.bf16.mxu0 0
    %228 = vmatpush1.bf16.msra.mxu0 %v215
    %229 = vmatprep.subr.bf16.mxu0 0
    %230 = vmatpush1.bf16.msra.mxu0 %v214
    %231 = vmatprep.subr.bf16.mxu0 0
    %232 = vmatpush1.bf16.msra.mxu0 %v213
    %233 = vmatprep.subr.bf16.mxu0 0
    %234 = vmatpush1.bf16.msra.mxu0 %v212
    %235 = vmatprep.subr.bf16.mxu0 0
    %236 = vmatpush1.bf16.msra.mxu0 %v211
    %237 = vmatprep.subr.bf16.mxu0 0
    %238 = vmatpush1.bf16.msra.mxu0 %v210
    %239 = vmatprep.subr.bf16.mxu0 0
    %240 = vmatpush1.bf16.msra.mxu0 %v209
    %241 = vmatprep.subr.bf16.mxu0 0
    %242 = vmatpush2.bf16.msra.mxu0 0
    %243 = vmatprep.subr.bf16.mxu0 0
    %244 = vmatpush2.bf16.msra.mxu0 0
    %245 = vmatprep.subr.bf16.mxu0 0
    %246 = vmatpush2.bf16.msra.mxu0 0
    %247 = vmatprep.subr.bf16.mxu0 0
    %248 = vmatpush2.bf16.msra.mxu0 0
    %249 = vmatprep.subr.bf16.mxu0 0
    %250 = vmatpush2.bf16.msra.mxu0 0
    %251 = vmatprep.subr.bf16.mxu0 0
    %252 = vmatpush2.bf16.msra.mxu0 0
    %253 = vmatprep.subr.bf16.mxu0 0
    %254 = vmatpush2.bf16.msra.mxu0 0
    %255 = vmatprep.subr.bf16.mxu0 0
    %256 = vmatpush2.bf16.msra.mxu0 0
    %257 = vmatprep.mubr.bf16.mxu0 0
    %258 = vmatmul.mubr.bf16.gmra.mxu0 %v153
    %v259 = vpop.f32.mrf.mxu0
    %v260 = vadd.f32 %v175, %v259
    %v261 = vpop.f32.mrf.mxu0
    %v262 = vpop.f32.mrf.mxu0
    %v263 = vpop.f32.mrf.mxu0
    %264 = vdwg.mxu0
    %265 = vst [vmem:[#allocation8] sm:$0x3] %v260
    // Predicated region
    $region30: #{tpu_custom_call.1} parent=1 // pred_check
      _
    $region31: #{tpu_custom_call.1} parent=1 // pred_check_branch
      %267 = sbr.rel (0) target = $region33
    $region32: #{tpu_custom_call.1} parent=1 // pred_region
      %s269 = ssub.s32 32, 32
      %270 = vsyncadd [#allocation4], %s269
      %s272 = sshll.u32 [#allocation8], 4
      %s273 = int_to_ptr.vmem [resolvable:$true] %s272
      %275 = dma.vmem_to_hbm [thread:$0]  %s273, 32, %s4, [#allocation4]
    $region33: #{tpu_custom_call.1} parent=1 // pred_fallthru
      _
    // Predicated region
    $region34: #{tpu_custom_call.1} parent=1 // pred_check
      _
    $region35: #{tpu_custom_call.1} parent=1 // pred_check_branch
      %277 = sbr.rel (0) target = $region37
    $region36: #{tpu_custom_call.1} parent=1 // pred_region
      %278 = dma.done [#allocation4], 32
    $region37: #{tpu_custom_call.1} parent=1 // pred_fallthru
      _
    %279 = vsyncpa [#allocation3], 1
    %280 = vsyncpa [#allocation6], 1
    %281 = vsyncpa [#allocation4], 1

</llo_original>
